<compile_context>
chip_gen: v7x
topology: tpu7x:2x2x1
jax: 0.10.0
libtpu: 0.0.40
codegen_flags: <defaults>
</compile_context>

<pallas_src>
import jax
import jax.numpy as jnp
from jax import lax
from jax.experimental import pallas as pl
from jax.experimental.pallas import tpu as pltpu


# ----------------------------- Pallas kernel --------------------------------
def _conv_kernel(x_ref, w_ref, b_ref, o_ref):
    # x_ref : (tn, H+KH-1, (W+KW-1)*C_in)   padded NHWC rows, lanes = (wp, ci)
    # w_ref : (KH, (W+KW-1)*C_in, W*C_out)  banded weight, lanes = (w, co)
    # b_ref : (1, W*C_out)                  bias tiled over w
    # o_ref : (tn, H, W*C_out)              lane-dense output slab
    tn, H, WC = o_ref.shape
    KH = w_ref.shape[0]
    K = x_ref.shape[2]
    R = tn * H

    # init accumulator with the bias (one broadcast per grid step)
    acc = jnp.broadcast_to(b_ref[...], (R, WC)).astype(jnp.float32)

    # fused im2col: KH shifted row-slabs x banded weight, accumulate on MXU
    for kh in range(KH):  # static unroll (KH = 3)
        a = x_ref[:, pl.ds(kh, H), :].reshape(R, K)
        acc = acc + jnp.dot(a, w_ref[kh], preferred_element_type=jnp.float32)

    o_ref[...] = acc.reshape(tn, H, WC).astype(o_ref.dtype)


# ------------------------- weight folding (wrapper glue) --------------------
def _banded_weight(weight, W):
    """Fold (C_out, C_in, KH, KW) into KH banded matrices of shape
    ((W+KW-1)*C_in, W*C_out): M[kh, wp*C_in+ci, w*C_out+co] = weight[co,ci,kh,wp-w]
    (0 outside the band).  One matmul per kh then applies all KW taps and all
    input channels at once, with the output lanes ordered (w, co)."""
    C_out, C_in, KH, KW = weight.shape
    Wp = W + KW - 1
    w_t = jnp.transpose(weight, (2, 3, 1, 0))               # (KH, KW, C_in, C_out)
    wp = jnp.arange(Wp)[:, None]
    wo = jnp.arange(W)[None, :]
    kw_idx = wp - wo                                          # (Wp, W)
    valid = (kw_idx >= 0) & (kw_idx < KW)
    kw_c = jnp.clip(kw_idx, 0, KW - 1)
    g = w_t[:, kw_c]                                          # (KH, Wp, W, C_in, C_out)
    g = jnp.where(valid[None, :, :, None, None], g, 0.0)
    g = jnp.transpose(g, (0, 1, 3, 2, 4))                     # (KH, Wp, C_in, W, C_out)
    return g.reshape(KH, Wp * C_in, W * C_out)


# --------------------------- TimeDistributed(Conv2d) ------------------------
def time_distributed_conv2d(input_seq, weight, bias, *, n_grid_steps=4):
    """input_seq: (B, T, C_in, H, W) -> (B, T, C_out, H, W). SAME conv (odd k, s=1)."""
    assert input_seq.ndim > 2
    B, T, C_in, H, W = input_seq.shape
    C_out, _, KH, KW = weight.shape
    ph, pw = (KH - 1) // 2, (KW - 1) // 2
    N = B * T
    Hp, Wp = H + KH - 1, W + KW - 1

    # --- TimeDistributed fold + NHWC + spatial zero-pad (small one-time glue) ---
    x = input_seq.reshape(N, C_in, H, W).transpose(0, 2, 3, 1)       # (N, H, W, Cin)
    x = jnp.pad(x, ((0, 0), (ph, ph), (pw, pw), (0, 0)))             # (N, Hp, Wp, Cin)
    x = x.reshape(N, Hp, Wp * C_in)                                  # lanes = (wp, ci)

    # --- grid: tile over images; >=2 steps so v7x megacore gets both cores ---
    steps = max(2, min(n_grid_steps, N)) if N > 1 else 1
    tn = pl.cdiv(N, steps)
    Npad = tn * steps
    if Npad != N:
        x = jnp.pad(x, ((0, Npad - N), (0, 0), (0, 0)))

    w_band = _banded_weight(weight, W)                 # (KH, Wp*C_in, W*C_out)
    b_row = jnp.tile(bias, W).reshape(1, W * C_out)    # lane (w, co) -> bias[co]

    out = pl.pallas_call(
        _conv_kernel,
        out_shape=jax.ShapeDtypeStruct((Npad, H, W * C_out), input_seq.dtype),
        grid_spec=pltpu.PrefetchScalarGridSpec(
            num_scalar_prefetch=0,
            grid=(steps,),
            in_specs=[
                pl.BlockSpec((tn, Hp, Wp * C_in), lambda i: (i, 0, 0)),
                pl.BlockSpec((KH, Wp * C_in, W * C_out), lambda i: (0, 0, 0)),
                pl.BlockSpec((1, W * C_out), lambda i: (0, 0)),
            ],
            out_specs=pl.BlockSpec((tn, H, W * C_out), lambda i: (i, 0, 0)),
        ),
        compiler_params=pltpu.CompilerParams(
            dimension_semantics=("parallel",)),
    )(x, w_band, b_row)

    # --- unfold back to PyTorch NCHW layout: (B, T, C_out, H, W) ---
    # TODO(synk): if the consumer accepts NHWC, return out[:N].reshape(B, T, H, W, C_out)
    # directly and skip this last full-output transpose (kernel stores are already
    # lane-dense; only this XLA relayout remains).
    out = out[:N].reshape(N, H, W, C_out).transpose(0, 3, 1, 2)
    return out.reshape(B, T, C_out, H, W)


# ----------------------------------- main ------------------------------------
if __name__ == "__main__":
    key = jax.random.PRNGKey(0)
    k_x, k_w, k_b = jax.random.split(key, 3)

    B, T, C_in, H, W = 2, 8, 4, 16, 16
    C_out, KH, KW = 8, 3, 3

    x = jax.random.normal(k_x, (B, T, C_in, H, W), dtype=jnp.float32)
    # deterministic, PyTorch-like uniform init
    fan_in = C_in * KH * KW
    bound = 1.0 / (fan_in ** 0.5)
    weight = jax.random.uniform(k_w, (C_out, C_in, KH, KW), jnp.float32, -bound, bound)
    bias = jax.random.uniform(k_b, (C_out,), jnp.float32, -bound, bound)

    fwd = jax.jit(time_distributed_conv2d)
    out = jax.block_until_ready(fwd(x, weight, bias))
    assert out.shape == (B, T, C_out, H, W), out.shape

    # correctness check against XLA conv on the folded batch
    x_fold = x.reshape(B * T, C_in, H, W)
    ref = lax.conv_general_dilated(
        x_fold, weight, window_strides=(1, 1), padding="SAME",
        dimension_numbers=("NCHW", "OIHW", "NCHW"),
    ) + bias.reshape(1, C_out, 1, 1)
    ref = ref.reshape(B, T, C_out, H, W)
    err = float(jnp.max(jnp.abs(out - ref)))
    assert err < 1e-4, err

    print("KERNEL_OK")
</pallas_src>

<mosaic_0001>
module attributes {stable_mosaic.version = 11 : i64} {
  func.func @_conv_kernel(%arg0: i32, %arg1: memref<4x18x72xf32, #tpu.memory_space<vmem>>, %arg2: memref<3x72x128xf32, #tpu.memory_space<vmem>>, %arg3: memref<1x128xf32, #tpu.memory_space<vmem>>, %arg4: memref<4x16x128xf32, #tpu.memory_space<vmem>>) attributes {dimension_semantics = [#tpu.dimension_semantics<parallel>], iteration_bounds = array<i64: 4>, scalar_prefetch = 0 : i64, scratch_operands = 0 : i64, tpu.core_type = #tpu.core_type<tc>, window_params = [{transform_indices = @transform_0, window_bounds = array<i64: 4, 18, 72>}, {pipeline_mode = #tpu.pipeline_mode<synchronous>, transform_indices = @transform_1, window_bounds = array<i64: 3, 72, 128>}, {pipeline_mode = #tpu.pipeline_mode<synchronous>, transform_indices = @transform_2, window_bounds = array<i64: 1, 128>}, {transform_indices = @transform_3, window_bounds = array<i64: 4, 16, 128>}]} {
    %c0 = arith.constant 0 : index
    %c0_0 = arith.constant 0 : index
    %0 = vector.load %arg3[%c0, %c0_0] : memref<1x128xf32, #tpu.memory_space<vmem>>, vector<1x128xf32>
    %1 = vector.shape_cast %0 : vector<1x128xf32> to vector<1x128xf32>
    %2 = vector.broadcast %1 : vector<1x128xf32> to vector<64x128xf32>
    %c0_1 = arith.constant 0 : index
    %c0_2 = arith.constant 0 : index
    %c0_3 = arith.constant 0 : index
    %3 = vector.load %arg1[%c0_1, %c0_2, %c0_3] : memref<4x18x72xf32, #tpu.memory_space<vmem>>, vector<4x16x72xf32>
    %4 = vector.shape_cast %3 : vector<4x16x72xf32> to vector<64x72xf32>
    %c0_4 = arith.constant 0 : index
    %c0_5 = arith.constant 0 : index
    %c0_6 = arith.constant 0 : index
    %5 = vector.load %arg2[%c0_4, %c0_5, %c0_6] : memref<3x72x128xf32, #tpu.memory_space<vmem>>, vector<1x72x128xf32>
    %6 = vector.shape_cast %5 : vector<1x72x128xf32> to vector<72x128xf32>
    %cst = arith.constant dense<0.000000e+00> : vector<64x128xf32>
    %7 = tpu.matmul %4, %6, %cst {dimension_numbers = #tpu.dot_dimension_numbers<[1], [0], [0], [1], [0, 0, 1, 1], [], []>} : vector<64x72xf32>, vector<72x128xf32>, vector<64x128xf32> -> vector<64x128xf32>
    %8 = arith.addf %2, %7 : vector<64x128xf32>
    %c0_7 = arith.constant 0 : index
    %c1 = arith.constant 1 : index
    %c0_8 = arith.constant 0 : index
    %9 = vector.load %arg1[%c0_7, %c1, %c0_8] : memref<4x18x72xf32, #tpu.memory_space<vmem>>, vector<4x16x72xf32>
    %10 = vector.shape_cast %9 : vector<4x16x72xf32> to vector<64x72xf32>
    %c1_9 = arith.constant 1 : index
    %c0_10 = arith.constant 0 : index
    %c0_11 = arith.constant 0 : index
    %11 = vector.load %arg2[%c1_9, %c0_10, %c0_11] : memref<3x72x128xf32, #tpu.memory_space<vmem>>, vector<1x72x128xf32>
    %12 = vector.shape_cast %11 : vector<1x72x128xf32> to vector<72x128xf32>
    %cst_12 = arith.constant dense<0.000000e+00> : vector<64x128xf32>
    %13 = tpu.matmul %10, %12, %cst_12 {dimension_numbers = #tpu.dot_dimension_numbers<[1], [0], [0], [1], [0, 0, 1, 1], [], []>} : vector<64x72xf32>, vector<72x128xf32>, vector<64x128xf32> -> vector<64x128xf32>
    %14 = arith.addf %8, %13 : vector<64x128xf32>
    %c0_13 = arith.constant 0 : index
    %c2 = arith.constant 2 : index
    %c0_14 = arith.constant 0 : index
    %15 = vector.load %arg1[%c0_13, %c2, %c0_14] : memref<4x18x72xf32, #tpu.memory_space<vmem>>, vector<4x16x72xf32>
    %16 = vector.shape_cast %15 : vector<4x16x72xf32> to vector<64x72xf32>
    %c2_15 = arith.constant 2 : index
    %c0_16 = arith.constant 0 : index
    %c0_17 = arith.constant 0 : index
    %17 = vector.load %arg2[%c2_15, %c0_16, %c0_17] : memref<3x72x128xf32, #tpu.memory_space<vmem>>, vector<1x72x128xf32>
    %18 = vector.shape_cast %17 : vector<1x72x128xf32> to vector<72x128xf32>
    %cst_18 = arith.constant dense<0.000000e+00> : vector<64x128xf32>
    %19 = tpu.matmul %16, %18, %cst_18 {dimension_numbers = #tpu.dot_dimension_numbers<[1], [0], [0], [1], [0, 0, 1, 1], [], []>} : vector<64x72xf32>, vector<72x128xf32>, vector<64x128xf32> -> vector<64x128xf32>
    %20 = arith.addf %14, %19 : vector<64x128xf32>
    %21 = vector.shape_cast %20 : vector<64x128xf32> to vector<4x16x128xf32>
    %c0_19 = arith.constant 0 : index
    %c0_20 = arith.constant 0 : index
    %c0_21 = arith.constant 0 : index
    %22 = vector.load %arg4[%c0_19, %c0_20, %c0_21] : memref<4x16x128xf32, #tpu.memory_space<vmem>>, vector<4x16x128xf32>
    tpu.vector_store %arg4[%c0_19, %c0_20, %c0_21], %21 {strides = array<i32>} : memref<4x16x128xf32, #tpu.memory_space<vmem>>, vector<4x16x128xf32>,
    return
  }
  func.func @transform_0(%arg0: i32) -> (i32, i32, i32) {
    %c0_i32 = arith.constant 0 : i32
    %c0_i32_0 = arith.constant 0 : i32
    %c0_i32_1 = arith.constant 0 : i32
    return %arg0, %c0_i32, %c0_i32_0 : i32, i32, i32
  }
  func.func @transform_1(%arg0: i32) -> (i32, i32, i32) {
    %c0_i32 = arith.constant 0 : i32
    %c0_i32_0 = arith.constant 0 : i32
    %c0_i32_1 = arith.constant 0 : i32
    %c0_i32_2 = arith.constant 0 : i32
    return %c0_i32, %c0_i32_0, %c0_i32_1 : i32, i32, i32
  }
  func.func @transform_2(%arg0: i32) -> (i32, i32) {
    %c0_i32 = arith.constant 0 : i32
    %c0_i32_0 = arith.constant 0 : i32
    %c0_i32_1 = arith.constant 0 : i32
    return %c0_i32, %c0_i32_0 : i32, i32
  }
  func.func @transform_3(%arg0: i32) -> (i32, i32, i32) {
    %c0_i32 = arith.constant 0 : i32
    %c0_i32_0 = arith.constant 0 : i32
    %c0_i32_1 = arith.constant 0 : i32
    return %arg0, %c0_i32, %c0_i32_0 : i32, i32, i32
  }
}

</mosaic_0001>

<llo_original>
// kernel: tile.8
$region0: #{tile.8}
  #allocation0 [shape = 's32[1]{0}', space=sflag, size = 0x4, scoped, tag = 'scoped memory for tile.8']
  %s0 = inlined_call_operand.vmem [shape: f32[8], index: 0, kind: input, shape index: {}]
  %s1 = inlined_call_operand.vmem [shape: f32[16,8], index: 1, kind: output, shape index: {}]
  // Predicated region
  $region2: #{tile.8} parent=0 // pred_check
    _
  $region3: #{tile.8} parent=0 // pred_check_branch
    %3 = sbr.rel (0) target = $region5
  $region4: #{tile.8} parent=0 // pred_region
    _
  $region5: #{tile.8} parent=0 // pred_fallthru
    _
  %v4 = vld [vmem:[%s0] ss:$0 sm:$0xff]
  %5 = vst [vmem:[%s1] sm:$0xff] %v4
  %s6 = scalar_lea.vmem %s1, 8
  %7 = vst [vmem:[%s6] sm:$0xff] %v4

// kernel: tile.9
$region0: #{tile.9}
  %s0 = inlined_call_operand.vmem [shape: f32[16,8], index: 0, kind: input, shape index: {}]
  %s1 = inlined_call_operand.vmem [shape: f32[1,128], index: 1, kind: output, shape index: {}]
  $region1: #{tile.9} parent=0
    #allocation0 [shape = 'u8[4096]{0}', space=vmem, size = 0x1000, scoped, tag = 'scoped mem for output reshape']
    %v2 = vld [vmem:[%s0] sm:$0x1]
    %vm3 = vcmask 64512
    %4 = vst.msk [vmem:[#allocation0] sm:$0x1] %vm3, %v2
    %s5 = scalar_lea.vmem %s0, 15
    %v6 = vld [vmem:[%s5] sm:$0x1]
    %7 = vrot.lane.b32.xlu0 %v6, 120
    %v8 = vpop.permute.xlu0 %7
    %vm9 = vcmask 1048512
    %10 = vst.msk [vmem:[#allocation0] sm:$0x1] %vm9, %v8
    %s11 = scalar_lea.vmem %s0, 14
    %v12 = vld [vmem:[%s11] sm:$0x1]
    %13 = vrot.lane.b32.xlu0 %v12, 112
    %v14 = vpop.permute.xlu0 %13
    %vm15 = vcmask 982912
    %16 = vst.msk [vmem:[#allocation0] sm:$0x1] %vm15, %v14
    %s17 = scalar_lea.vmem %s0, 13
    %v18 = vld [vmem:[%s17] sm:$0x1]
    %19 = vrot.lane.b32.xlu0 %v18, 104
    %v20 = vpop.permute.xlu0 %19
    %vm21 = vcmask 917312
    %22 = vst.msk [vmem:[#allocation0] sm:$0x1] %vm21, %v20
    %s23 = scalar_lea.vmem %s0, 12
    %v24 = vld [vmem:[%s23] sm:$0x1]
    %25 = vrot.lane.b32.xlu0 %v24, 96
    %v26 = vpop.permute.xlu0 %25
    %vm27 = vcmask 851712
    %28 = vst.msk [vmem:[#allocation0] sm:$0x1] %vm27, %v26
    %s29 = scalar_lea.vmem %s0, 11
    %v30 = vld [vmem:[%s29] sm:$0x1]
    %31 = vrot.lane.b32.xlu0 %v30, 88
    %v32 = vpop.permute.xlu0 %31
    %vm33 = vcmask 786112
    %34 = vst.msk [vmem:[#allocation0] sm:$0x1] %vm33, %v32
    %s35 = scalar_lea.vmem %s0, 10
    %v36 = vld [vmem:[%s35] sm:$0x1]
    %37 = vrot.lane.b32.xlu0 %v36, 80
    %v38 = vpop.permute.xlu0 %37
    %vm39 = vcmask 720512
    %40 = vst.msk [vmem:[#allocation0] sm:$0x1] %vm39, %v38
    %s41 = scalar_lea.vmem %s0, 9
    %v42 = vld [vmem:[%s41] sm:$0x1]
    %43 = vrot.lane.b32.xlu0 %v42, 72
    %v44 = vpop.permute.xlu0 %43
    %vm45 = vcmask 654912
    %46 = vst.msk [vmem:[#allocation0] sm:$0x1] %vm45, %v44
    %s47 = scalar_lea.vmem %s0, 8
    %v48 = vld [vmem:[%s47] sm:$0x1]
    %49 = vrot.lane.b32.xlu0 %v48, 64
    %v50 = vpop.permute.xlu0 %49
    %vm51 = vcmask 589312
    %52 = vst.msk [vmem:[#allocation0] sm:$0x1] %vm51, %v50
    %s53 = scalar_lea.vmem %s0, 7
    %v54 = vld [vmem:[%s53] sm:$0x1]
    %55 = vrot.lane.b32.xlu0 %v54, 56
    %v56 = vpop.permute.xlu0 %55
    %vm57 = vcmask 523712
    %58 = vst.msk [vmem:[#allocation0] sm:$0x1] %vm57, %v56
    %s59 = scalar_lea.vmem %s0, 6
    %v60 = vld [vmem:[%s59] sm:$0x1]
    %61 = vrot.lane.b32.xlu0 %v60, 48
    %v62 = vpop.permute.xlu0 %61
    %vm63 = vcmask 458112
    %64 = vst.msk [vmem:[#allocation0] sm:$0x1] %vm63, %v62
    %s65 = scalar_lea.vmem %s0, 5
    %v66 = vld [vmem:[%s65] sm:$0x1]
    %67 = vrot.lane.b32.xlu0 %v66, 40
    %v68 = vpop.permute.xlu0 %67
    %vm69 = vcmask 392512
    %70 = vst.msk [vmem:[#allocation0] sm:$0x1] %vm69, %v68
    %s71 = scalar_lea.vmem %s0, 4
    %v72 = vld [vmem:[%s71] sm:$0x1]
    %73 = vrot.lane.b32.xlu0 %v72, 32
    %v74 = vpop.permute.xlu0 %73
    %vm75 = vcmask 326912
    %76 = vst.msk [vmem:[#allocation0] sm:$0x1] %vm75, %v74
    %s77 = scalar_lea.vmem %s0, 3
    %v78 = vld [vmem:[%s77] sm:$0x1]
    %79 = vrot.lane.b32.xlu0 %v78, 24
    %v80 = vpop.permute.xlu0 %79
    %vm81 = vcmask 261312
    %82 = vst.msk [vmem:[#allocation0] sm:$0x1] %vm81, %v80
    %s83 = scalar_lea.vmem %s0, 2
    %v84 = vld [vmem:[%s83] sm:$0x1]
    %85 = vrot.lane.b32.xlu0 %v84, 16
    %v86 = vpop.permute.xlu0 %85
    %vm87 = vcmask 195712
    %88 = vst.msk [vmem:[#allocation0] sm:$0x1] %vm87, %v86
    %s89 = scalar_lea.vmem %s0, 1
    %v90 = vld [vmem:[%s89] sm:$0x1]
    %91 = vrot.lane.b32.xlu0 %v90, 8
    %v92 = vpop.permute.xlu0 %91
    %vm93 = vcmask 130112
    %94 = vst.msk [vmem:[#allocation0] sm:$0x1] %vm93, %v92
    %s96 = sshllo.u32 0, 1
    %v98 = vld [vmem:[#allocation0] sm:%s96]
    %s99 = sshllo.u32 0, 1
    %100 = vst [vmem:[%s1] sm:%s99] %v98

// kernel: time_distributed_conv2d.1
$region0: #{time_distributed_conv2d.1}
  #allocation0 [shape = 'u32[]', space=smem, size = 0x4, offset = 0x4, fixed_abs, tag = 'smem constant byte address 0x4 - core index']
  #allocation1 [shape = 'u32[144,128]{1,0:T(1,128)}', space=vmem, size = 0x12000, scoped, tag = 'internal scratch']
  %s0 = inlined_call_operand.vmem [shape: f32[16,18,72], index: 0, kind: input, shape index: {}]
  %s1 = inlined_call_operand.vmem [shape: f32[3,72,128], index: 1, kind: input, shape index: {}]
  %s2 = inlined_call_operand.vmem [shape: f32[1,128], index: 2, kind: input, shape index: {}]
  %s3 = inlined_call_operand.vmem [shape: f32[16,16,128], index: 3, kind: output, shape index: {}]
  %s4 = sld [smem:[#allocation0]]
  $region45: #{time_distributed_conv2d.1} parent=0
    _
  %s6 = ssub.s32 1, %s4
  %s7 = scalar_select 0, %s6, %s4
  loop: start=0, step=1, limit=6
  $region2: #{time_distributed_conv2d.1} parent=0 // loop_pre_header
    _
  $region3: #{time_distributed_conv2d.1} parent=0 // loop_header
    %s9 = sphi 0, %s13
    %p10 = scmp.ge.s32.totalorder %s9, 6
    %s19 = sphi 0, %s21
    %s22 = sphi 0, %s19
    %s23 = sphi 0, %s22
    %s39 = sphi 0, %s23
    %s43 = sphi 0, %s43
    %s45 = sphi 0, %s43
    %s46 = sphi 0, %s45
    %s60 = sphi 0, %s46
    %s64 = sphi 0, %s64
    %s66 = sphi 0, %s64
    %s67 = sphi 0, %s66
    %s81 = sphi 0, %s67
    %s87 = sphi 0, %s89
    %s90 = sphi 0, %s87
    %s91 = sphi 0, %s90
    %s107 = sphi 0, %s91
  $region4: #{time_distributed_conv2d.1} parent=0 // loop_header_branch
    %12 = sbr.rel (%p10) target = $region8
  $region5: #{time_distributed_conv2d.1} parent=0 // loop_body
    %s14 = ssub.s32 %s9, 1
    %s15 = ssub.s32 %s9, 2
    %s16 = sadd.s32 %s9, 1
    %s17 = ssub.s32 %s9, %s16
    %p18 = scmp.eq.s32.totalorder %s17, 0
    %s20 = sadd.s32 %s19, 1
    %s21 = scalar_select %p18, %s19, %s20
    %p24 = pneg %p18
    %p25 = scmp.eq.s32.totalorder %s9, 3
    %p26 = por %p24, %p25
    %p27 = scmp.ne.s32.totalorder %s19, %s22
    %p28 = scmp.eq.s32.totalorder %s9, 0
    %p29 = por %p27, %p28
    %p30 = scmp.ne.s32.totalorder %s19, %s22
    %p31 = scmp.eq.s32.totalorder %s14, 3
    %p32 = por %p30, %p31
    %p33 = scmp.ne.s32.totalorder %s22, %s23
    %p34 = scmp.eq.s32.totalorder %s14, 0
    %p35 = por %p33, %p34
    %p36 = scmp.ne.s32.totalorder %s22, %s23
    %p37 = scmp.eq.s32.totalorder %s15, 3
    %p38 = por %p36, %p37
    %p40 = scmp.ne.s32.totalorder %s23, %s39
    %p41 = scmp.eq.s32.totalorder %s15, 0
    %p42 = por %p40, %p41
    %s44 = sadd.s32 %s43, 1
    %p47 = scmp.eq.s32.totalorder %s9, 3
    %p48 = scmp.ne.s32.totalorder %s43, %s45
    %p49 = scmp.eq.s32.totalorder %s9, 0
    %p50 = por %p48, %p49
    %p51 = scmp.ne.s32.totalorder %s43, %s45
    %p52 = scmp.eq.s32.totalorder %s14, 3
    %p53 = por %p51, %p52
    %p54 = scmp.ne.s32.totalorder %s45, %s46
    %p55 = scmp.eq.s32.totalorder %s14, 0
    %p56 = por %p54, %p55
    %p57 = scmp.ne.s32.totalorder %s45, %s46
    %p58 = scmp.eq.s32.totalorder %s15, 3
    %p59 = por %p57, %p58
    %p61 = scmp.ne.s32.totalorder %s46, %s60
    %p62 = scmp.eq.s32.totalorder %s15, 0
    %p63 = por %p61, %p62
    %s65 = sadd.s32 %s64, 1
    %p68 = scmp.eq.s32.totalorder %s9, 3
    %p69 = scmp.ne.s32.totalorder %s64, %s66
    %p70 = scmp.eq.s32.totalorder %s9, 0
    %p71 = por %p69, %p70
    %p72 = scmp.ne.s32.totalorder %s64, %s66
    %p73 = scmp.eq.s32.totalorder %s14, 3
    %p74 = por %p72, %p73
    %p75 = scmp.ne.s32.totalorder %s66, %s67
    %p76 = scmp.eq.s32.totalorder %s14, 0
    %p77 = por %p75, %p76
    %p78 = scmp.ne.s32.totalorder %s66, %s67
    %p79 = scmp.eq.s32.totalorder %s15, 3
    %p80 = por %p78, %p79
    %p82 = scmp.ne.s32.totalorder %s67, %s81
    %p83 = scmp.eq.s32.totalorder %s15, 0
    %p84 = por %p82, %p83
    %s85 = ssub.s32 %s9, %s16
    %p86 = scmp.eq.s32.totalorder %s85, 0
    %s88 = sadd.s32 %s87, 1
    %s89 = scalar_select %p86, %s87, %s88
    %p92 = pneg %p86
    %p93 = scmp.eq.s32.totalorder %s9, 3
    %p94 = por %p92, %p93
    %p95 = scmp.ne.s32.totalorder %s87, %s90
    %p96 = scmp.eq.s32.totalorder %s9, 0
    %p97 = por %p95, %p96
    %p98 = scmp.ne.s32.totalorder %s87, %s90
    %p99 = scmp.eq.s32.totalorder %s14, 3
    %p100 = por %p98, %p99
    %p101 = scmp.ne.s32.totalorder %s90, %s91
    %p102 = scmp.eq.s32.totalorder %s14, 0
    %p103 = por %p101, %p102
    %p104 = scmp.ne.s32.totalorder %s90, %s91
    %p105 = scmp.eq.s32.totalorder %s15, 3
    %p106 = por %p104, %p105
    %p108 = scmp.ne.s32.totalorder %s91, %s107
    %p109 = scmp.eq.s32.totalorder %s15, 0
    %p110 = por %p108, %p109
    %p111 = scmp.le.s32.totalorder 1, %s9
    %p112 = scmp.lt.s32.totalorder %s9, 5
    %p113 = pnand %p111, %p112
    %p114 = pneg %p113
    // Predicated region
    $region9: #{time_distributed_conv2d.1} parent=5 // pred_check
      _
    $region10: #{time_distributed_conv2d.1} parent=5 // pred_check_branch
      %116 = sbr.rel (%p113) target = $region12
    $region11: #{time_distributed_conv2d.1} parent=5 // pred_region
      %s117 = ssub.s32 %s9, 1
      // Predicated region
      $region13: #{time_distributed_conv2d.1} parent=11 // pred_check
        %p118 = pneg %p56
      $region14: #{time_distributed_conv2d.1} parent=11 // pred_check_branch
        %120 = sbr.rel (%p118) target = $region16
      $region15: #{time_distributed_conv2d.1} parent=11 // pred_region
        _
      $region16: #{time_distributed_conv2d.1} parent=11 // pred_fallthru
        _
      // Predicated region
      $region17: #{time_distributed_conv2d.1} parent=11 // pred_check
        %p121 = pneg %p77
      $region18: #{time_distributed_conv2d.1} parent=11 // pred_check_branch
        %123 = sbr.rel (%p121) target = $region20
      $region19: #{time_distributed_conv2d.1} parent=11 // pred_region
        _
      $region20: #{time_distributed_conv2d.1} parent=11 // pred_fallthru
        _
    $region12: #{time_distributed_conv2d.1} parent=5 // pred_fallthru
      _
    %p124 = scmp.lt.s32.totalorder %s9, 4
    // Predicated region
    $region21: #{time_distributed_conv2d.1} parent=5 // pred_check
      %p125 = pneg %p124
    $region22: #{time_distributed_conv2d.1} parent=5 // pred_check_branch
      %127 = sbr.rel (%p125) target = $region24
    $region23: #{time_distributed_conv2d.1} parent=5 // pred_region
      // Predicated region
      $region25: #{time_distributed_conv2d.1} parent=23 // pred_check
        %p128 = pneg %p29
      $region26: #{time_distributed_conv2d.1} parent=23 // pred_check_branch
        %130 = sbr.rel (%p128) target = $region28
      $region27: #{time_distributed_conv2d.1} parent=23 // pred_region
        %s131 = smul.u32 4, %s9
        %p132 = scmp.lt.s32.totalorder %s131, 15
        %s133 = scalar_select %p132, %s131, 15
        %s134 = smul.addr %s133, 3
        %s135 = smul.addr %s134, 8
        %s136 = scalar_lea.vmem %s0, %s135
        %s137 = smul.u32 4, %s9
      $region28: #{time_distributed_conv2d.1} parent=23 // pred_fallthru
        _
    $region24: #{time_distributed_conv2d.1} parent=5 // pred_fallthru
      _
    %p138 = scmp.le.s32.totalorder 1, %s9
    %p139 = scmp.lt.s32.totalorder %s9, 5
    %p140 = pnand %p138, %p139
    %p141 = pneg %p140
    // Predicated region
    $region29: #{time_distributed_conv2d.1} parent=5 // pred_check
      _
    $region30: #{time_distributed_conv2d.1} parent=5 // pred_check_branch
      %143 = sbr.rel (%p140) target = $region32
    $region31: #{time_distributed_conv2d.1} parent=5 // pred_region
      %s144 = ssub.s32 %s9, 1
      %s145 = smul.u32 4, %s14
      %p146 = scmp.lt.s32.totalorder %s145, 15
      %s147 = scalar_select %p146, %s145, 15
      %s148 = smul.addr %s147, 3
      %s149 = smul.addr %s148, 8
      %s150 = scalar_lea.vmem %s0, %s149
      %p151 = pneg %p35
      %p152 = pneg %p32
      %p153 = pneg %p56
      %p154 = pneg %p53
      %p155 = pneg %p77
      %p156 = pneg %p74
      %p157 = pneg %p103
      %p158 = pneg %p100
      %s159 = smul.u32 4, %s14
      %p160 = scmp.lt.s32.totalorder %s159, 15
      %s161 = scalar_select %p160, %s159, 15
      %s162 = smul.addr %s161, 2
      %s163 = smul.addr %s162, 8
      %s164 = scalar_lea.vmem %s3, %s163
      %s165 = smul.u32 4, %s14
      %p166 = scmp.lt.s32.totalorder %s165, 15
      %s167 = scalar_select %p166, %s165, 15
      %s168 = smul.addr %s167, 3
      %s169 = smul.addr %s168, 8
      %s170 = scalar_lea.vmem %s0, %s169
      %s171 = smul.u32 4, %s14
      %s172 = smul.u32 4, %s14
      %p173 = scmp.lt.s32.totalorder %s172, 15
      %s174 = scalar_select %p173, %s172, 15
      %s175 = smul.addr %s174, 2
      %s176 = smul.addr %s175, 8
      %s177 = scalar_lea.vmem %s3, %s176
      %s178 = smul.u32 4, %s14
      %v179 = vld [vmem:[%s2] sm:$0x1]
      %v181 = vlaneseq
      %v182 = vshrl.u32 %v181, 7
      %v183 = vsub.s32 0, %v182
      %v184 = vrot.slane %v179, %v183
      %v186 = vld [vmem:[%s170] sm:$0xff]
      %v187 = vld [vmem:[%s170 + $0x8] sm:$0xff]
      %v188 = vld [vmem:[%s170 + $0x18] sm:$0xff]
      %v189 = vld [vmem:[%s170 + $0x20] sm:$0xff]
      %v190 = vld [vmem:[%s170 + $0x30] sm:$0xff]
      %v191 = vld [vmem:[%s170 + $0x38] sm:$0xff]
      %v192 = vld [vmem:[%s170 + $0x48] sm:$0xff]
      %v193 = vld [vmem:[%s170 + $0x50] sm:$0xff]
      %v194 = vld [vmem:[%s1] sm:$0xff]
      %v195 = vld [vmem:[%s1 + $0x8] sm:$0xff]
      %v196 = vld [vmem:[%s1 + $0x10] sm:$0xff]
      %v197 = vld [vmem:[%s1 + $0x18] sm:$0xff]
      %v198 = vld [vmem:[%s1 + $0x20] sm:$0xff]
      %v199 = vld [vmem:[%s1 + $0x28] sm:$0xff]
      %v200 = vld [vmem:[%s1 + $0x30] sm:$0xff]
      %v201 = vld [vmem:[%s1 + $0x38] sm:$0xff]
      %v202 = vld [vmem:[%s1 + $0x40] sm:$0xff]
      %vm203 = vcmask 588800
      %v205 = vsel %vm203, %v186, 0
      %v208 = vsel %vm203, %v187, 0
      %v211 = vsel %vm203, %v188, 0
      %v214 = vsel %vm203, %v189, 0
      %v217 = vsel %vm203, %v190, 0
      %v220 = vsel %vm203, %v191, 0
      %v223 = vsel %vm203, %v192, 0
      %v226 = vsel %vm203, %v193, 0
      %228 = vmatprep.subr.mxu0 0.0
      %229 = vmatpush1.msra.mxu0 %v194
      %230 = vmatprep.subr.mxu0 0.0
      %231 = vmatpush1.msra.mxu0 %v195
      %232 = vmatprep.subr.mxu0 0.0
      %233 = vmatpush1.msra.mxu0 %v196
      %234 = vmatprep.subr.mxu0 0.0
      %235 = vmatpush1.msra.mxu0 %v197
      %236 = vmatprep.subr.mxu0 0.0
      %237 = vmatpush1.msra.mxu0 %v198
      %238 = vmatprep.subr.mxu0 0.0
      %239 = vmatpush1.msra.mxu0 %v199
      %240 = vmatprep.subr.mxu0 0.0
      %241 = vmatpush1.msra.mxu0 %v200
      %242 = vmatprep.subr.mxu0 0.0
      %243 = vmatpush1.msra.mxu0 %v201
      %244 = vmatprep.subr.mxu0 0.0
      %245 = vmatpush1.msra.mxu0 %v202
      %246 = vmatprep.subr.mxu0 0.0
      %247 = vmatpush1.msra.mxu0 0.0
      %248 = vmatprep.subr.mxu0 0.0
      %249 = vmatpush1.msra.mxu0 0.0
      %250 = vmatprep.subr.mxu0 0.0
      %251 = vmatpush1.msra.mxu0 0.0
      %252 = vmatprep.subr.mxu0 0.0
      %253 = vmatpush1.msra.mxu0 0.0
      %254 = vmatprep.subr.mxu0 0.0
      %255 = vmatpush1.msra.mxu0 0.0
      %256 = vmatprep.subr.mxu0 0.0
      %257 = vmatpush1.msra.mxu0 0.0
      %258 = vmatprep.subr.mxu0 0.0
      %259 = vmatpush1.msra.mxu0 0.0
      %260 = vmatprep.subr.mxu0 0.0
      %261 = vmatpush1.msra.mxu0 0.0
      %262 = vmatprep.subr.mxu0 0.0
      %263 = vmatpush1.msra.mxu0 0.0
      %264 = vmatprep.subr.mxu0 0.0
      %265 = vmatpush1.msra.mxu0 0.0
      %266 = vmatprep.subr.mxu0 0.0
      %267 = vmatpush1.msra.mxu0 0.0
      %268 = vmatprep.subr.mxu0 0.0
      %269 = vmatpush1.msra.mxu0 0.0
      %270 = vmatprep.subr.mxu0 0.0
      %271 = vmatpush1.msra.mxu0 0.0
      %272 = vmatprep.subr.mxu0 0.0
      %273 = vmatpush1.msra.mxu0 0.0
      %274 = vmatprep.subr.mxu0 0.0
      %275 = vmatpush1.msra.mxu0 0.0
      %276 = vmatprep.subr.mxu0 0.0
      %277 = vmatpush1.msra.mxu0 0.0
      %278 = vmatprep.subr.mxu0 0.0
      %279 = vmatpush1.msra.mxu0 0.0
      %280 = vmatprep.subr.mxu0 0.0
      %281 = vmatpush1.msra.mxu0 0.0
      %282 = vmatprep.subr.mxu0 0.0
      %283 = vmatpush1.msra.mxu0 0.0
      %284 = vmatprep.subr.mxu0 0.0
      %285 = vmatpush1.msra.mxu0 0.0
      %286 = vmatprep.subr.mxu0 0.0
      %287 = vmatpush1.msra.mxu0 0.0
      %288 = vmatprep.subr.mxu0 0.0
      %289 = vmatpush1.msra.mxu0 0.0
      %290 = vmatprep.subr.mxu0 0.0
      %291 = vmatpush1.msra.mxu0 0.0
      %292 = vmatprep.mubr.f32.mxu0 0.0
      %293 = vmatmul.mubr.f32.gmra.mrb[0].mxu0 %v205
      %v294 = vpop.f32.mrb[0].mxu0
      %v295 = vadd.f32 0.0, %v294
      %v296 = vpop.f32.mrb[0].mxu0
      %297 = vmatprep.mubr.f32.mxu0 0.0
      %298 = vmatmul.mubr.f32.gmra.mrb[0].mxu0 %v208
      %v299 = vpop.f32.mrb[0].mxu0
      %v300 = vadd.f32 0.0, %v299
      %v301 = vpop.f32.mrb[0].mxu0
      %302 = vmatprep.mubr.f32.mxu0 0.0
      %303 = vmatmul.mubr.f32.gmra.mrb[0].mxu0 %v211
      %v304 = vpop.f32.mrb[0].mxu0
      %v305 = vadd.f32 0.0, %v304
      %v306 = vpop.f32.mrb[0].mxu0
      %307 = vmatprep.mubr.f32.mxu0 0.0
      %308 = vmatmul.mubr.f32.gmra.mrb[0].mxu0 %v214
      %v309 = vpop.f32.mrb[0].mxu0
      %v310 = vadd.f32 0.0, %v309
      %v311 = vpop.f32.mrb[0].mxu0
      %312 = vmatprep.mubr.f32.mxu0 0.0
      %313 = vmatmul.mubr.f32.gmra.mrb[0].mxu0 %v217
      %v314 = vpop.f32.mrb[0].mxu0
      %v315 = vadd.f32 0.0, %v314
      %v316 = vpop.f32.mrb[0].mxu0
      %317 = vmatprep.mubr.f32.mxu0 0.0
      %318 = vmatmul.mubr.f32.gmra.mrb[0].mxu0 %v220
      %v319 = vpop.f32.mrb[0].mxu0
      %v320 = vadd.f32 0.0, %v319
      %v321 = vpop.f32.mrb[0].mxu0
      %322 = vmatprep.mubr.f32.mxu0 0.0
      %323 = vmatmul.mubr.f32.gmra.mrb[0].mxu0 %v223
      %v324 = vpop.f32.mrb[0].mxu0
      %v325 = vadd.f32 0.0, %v324
      %v326 = vpop.f32.mrb[0].mxu0
      %327 = vmatprep.mubr.f32.mxu0 0.0
      %328 = vmatmul.mubr.f32.gmra.mrb[0].mxu0 %v226
      %v329 = vpop.f32.mrb[0].mxu0
      %v330 = vadd.f32 0.0, %v329
      %v331 = vpop.f32.mrb[0].mxu0
      %332 = vdwg.mxu0
      %v333 = vadd.f32 %v184, %v295
      %v334 = vadd.f32 %v184, %v300
      %v335 = vadd.f32 %v184, %v305
      %v336 = vadd.f32 %v184, %v310
      %v337 = vadd.f32 %v184, %v315
      %v338 = vadd.f32 %v184, %v320
      %v339 = vadd.f32 %v184, %v325
      %v340 = vadd.f32 %v184, %v330
      %v341 = vld [vmem:[%s170 + $0x1] sm:$0xff]
      %v342 = vld [vmem:[%s170 + $0x9] sm:$0xff]
      %v343 = vld [vmem:[%s170 + $0x19] sm:$0xff]
      %v344 = vld [vmem:[%s170 + $0x21] sm:$0xff]
      %v345 = vld [vmem:[%s170 + $0x31] sm:$0xff]
      %v346 = vld [vmem:[%s170 + $0x39] sm:$0xff]
      %v347 = vld [vmem:[%s170 + $0x49] sm:$0xff]
      %v348 = vld [vmem:[%s170 + $0x51] sm:$0xff]
      %s349 = scalar_lea.vmem %s1, 72
      %v350 = vld [vmem:[%s349] sm:$0xff]
      %v351 = vld [vmem:[%s349 + $0x8] sm:$0xff]
      %v352 = vld [vmem:[%s349 + $0x10] sm:$0xff]
      %v353 = vld [vmem:[%s349 + $0x18] sm:$0xff]
      %v354 = vld [vmem:[%s349 + $0x20] sm:$0xff]
      %v355 = vld [vmem:[%s349 + $0x28] sm:$0xff]
      %v356 = vld [vmem:[%s349 + $0x30] sm:$0xff]
      %v357 = vld [vmem:[%s349 + $0x38] sm:$0xff]
      %v358 = vld [vmem:[%s349 + $0x40] sm:$0xff]
      %v360 = vsel %vm203, %v341, 0
      %v363 = vsel %vm203, %v342, 0
      %v366 = vsel %vm203, %v343, 0
      %v369 = vsel %vm203, %v344, 0
      %v372 = vsel %vm203, %v345, 0
      %v375 = vsel %vm203, %v346, 0
      %v378 = vsel %vm203, %v347, 0
      %v381 = vsel %vm203, %v348, 0
      %383 = vmatprep.subr.mxu0 0.0
      %384 = vmatpush1.msra.mxu0 %v350
      %385 = vmatprep.subr.mxu0 0.0
      %386 = vmatpush1.msra.mxu0 %v351
      %387 = vmatprep.subr.mxu0 0.0
      %388 = vmatpush1.msra.mxu0 %v352
      %389 = vmatprep.subr.mxu0 0.0
      %390 = vmatpush1.msra.mxu0 %v353
      %391 = vmatprep.subr.mxu0 0.0
      %392 = vmatpush1.msra.mxu0 %v354
      %393 = vmatprep.subr.mxu0 0.0
      %394 = vmatpush1.msra.mxu0 %v355
      %395 = vmatprep.subr.mxu0 0.0
      %396 = vmatpush1.msra.mxu0 %v356
      %397 = vmatprep.subr.mxu0 0.0
      %398 = vmatpush1.msra.mxu0 %v357
      %399 = vmatprep.subr.mxu0 0.0
      %400 = vmatpush1.msra.mxu0 %v358
      %401 = vmatprep.subr.mxu0 0.0
      %402 = vmatpush1.msra.mxu0 0.0
      %403 = vmatprep.subr.mxu0 0.0
      %404 = vmatpush1.msra.mxu0 0.0
      %405 = vmatprep.subr.mxu0 0.0
      %406 = vmatpush1.msra.mxu0 0.0
      %407 = vmatprep.subr.mxu0 0.0
      %408 = vmatpush1.msra.mxu0 0.0
      %409 = vmatprep.subr.mxu0 0.0
      %410 = vmatpush1.msra.mxu0 0.0
      %411 = vmatprep.subr.mxu0 0.0
      %412 = vmatpush1.msra.mxu0 0.0
      %413 = vmatprep.subr.mxu0 0.0
      %414 = vmatpush1.msra.mxu0 0.0
      %415 = vmatprep.subr.mxu0 0.0
      %416 = vmatpush1.msra.mxu0 0.0
      %417 = vmatprep.subr.mxu0 0.0
      %418 = vmatpush1.msra.mxu0 0.0
      %419 = vmatprep.subr.mxu0 0.0
      %420 = vmatpush1.msra.mxu0 0.0
      %421 = vmatprep.subr.mxu0 0.0
      %422 = vmatpush1.msra.mxu0 0.0
      %423 = vmatprep.subr.mxu0 0.0
      %424 = vmatpush1.msra.mxu0 0.0
      %425 = vmatprep.subr.mxu0 0.0
      %426 = vmatpush1.msra.mxu0 0.0
      %427 = vmatprep.subr.mxu0 0.0
      %428 = vmatpush1.msra.mxu0 0.0
      %429 = vmatprep.subr.mxu0 0.0
      %430 = vmatpush1.msra.mxu0 0.0
      %431 = vmatprep.subr.mxu0 0.0
      %432 = vmatpush1.msra.mxu0 0.0
      %433 = vmatprep.subr.mxu0 0.0
      %434 = vmatpush1.msra.mxu0 0.0
      %435 = vmatprep.subr.mxu0 0.0
      %436 = vmatpush1.msra.mxu0 0.0
      %437 = vmatprep.subr.mxu0 0.0
      %438 = vmatpush1.msra.mxu0 0.0
      %439 = vmatprep.subr.mxu0 0.0
      %440 = vmatpush1.msra.mxu0 0.0
      %441 = vmatprep.subr.mxu0 0.0
      %442 = vmatpush1.msra.mxu0 0.0
      %443 = vmatprep.subr.mxu0 0.0
      %444 = vmatpush1.msra.mxu0 0.0
      %445 = vmatprep.subr.mxu0 0.0
      %446 = vmatpush1.msra.mxu0 0.0
      %447 = vmatprep.mubr.f32.mxu0 0.0
      %448 = vmatmul.mubr.f32.gmra.mrb[0].mxu0 %v360
      %v449 = vpop.f32.mrb[0].mxu0
      %v450 = vadd.f32 0.0, %v449
      %v451 = vpop.f32.mrb[0].mxu0
      %452 = vmatprep.mubr.f32.mxu0 0.0
      %453 = vmatmul.mubr.f32.gmra.mrb[0].mxu0 %v363
      %v454 = vpop.f32.mrb[0].mxu0
      %v455 = vadd.f32 0.0, %v454
      %v456 = vpop.f32.mrb[0].mxu0
      %457 = vmatprep.mubr.f32.mxu0 0.0
      %458 = vmatmul.mubr.f32.gmra.mrb[0].mxu0 %v366
      %v459 = vpop.f32.mrb[0].mxu0
      %v460 = vadd.f32 0.0, %v459
      %v461 = vpop.f32.mrb[0].mxu0
      %462 = vmatprep.mubr.f32.mxu0 0.0
      %463 = vmatmul.mubr.f32.gmra.mrb[0].mxu0 %v369
      %v464 = vpop.f32.mrb[0].mxu0
      %v465 = vadd.f32 0.0, %v464
      %v466 = vpop.f32.mrb[0].mxu0
      %467 = vmatprep.mubr.f32.mxu0 0.0
      %468 = vmatmul.mubr.f32.gmra.mrb[0].mxu0 %v372
      %v469 = vpop.f32.mrb[0].mxu0
      %v470 = vadd.f32 0.0, %v469
      %v471 = vpop.f32.mrb[0].mxu0
      %472 = vmatprep.mubr.f32.mxu0 0.0
      %473 = vmatmul.mubr.f32.gmra.mrb[0].mxu0 %v375
      %v474 = vpop.f32.mrb[0].mxu0
      %v475 = vadd.f32 0.0, %v474
      %v476 = vpop.f32.mrb[0].mxu0
      %477 = vmatprep.mubr.f32.mxu0 0.0
      %478 = vmatmul.mubr.f32.gmra.mrb[0].mxu0 %v378
      %v479 = vpop.f32.mrb[0].mxu0
      %v480 = vadd.f32 0.0, %v479
      %v481 = vpop.f32.mrb[0].mxu0
      %482 = vmatprep.mubr.f32.mxu0 0.0
      %483 = vmatmul.mubr.f32.gmra.mrb[0].mxu0 %v381
      %v484 = vpop.f32.mrb[0].mxu0
      %v485 = vadd.f32 0.0, %v484
      %v486 = vpop.f32.mrb[0].mxu0
      %487 = vdwg.mxu0
      %v488 = vadd.f32 %v333, %v450
      %v489 = vadd.f32 %v334, %v455
      %v490 = vadd.f32 %v335, %v460
      %v491 = vadd.f32 %v336, %v465
      %v492 = vadd.f32 %v337, %v470
      %v493 = vadd.f32 %v338, %v475
      %v494 = vadd.f32 %v339, %v480
      %v495 = vadd.f32 %v340, %v485
      %v496 = vld [vmem:[%s170 + $0x2] sm:$0xff]
      %v497 = vld [vmem:[%s170 + $0xa] sm:$0xff]
      %v498 = vld [vmem:[%s170 + $0x1a] sm:$0xff]
      %v499 = vld [vmem:[%s170 + $0x22] sm:$0xff]
      %v500 = vld [vmem:[%s170 + $0x32] sm:$0xff]
      %v501 = vld [vmem:[%s170 + $0x3a] sm:$0xff]
      %v502 = vld [vmem:[%s170 + $0x4a] sm:$0xff]
      %v503 = vld [vmem:[%s170 + $0x52] sm:$0xff]
      %s504 = scalar_lea.vmem %s1, 144
      %v505 = vld [vmem:[%s504] sm:$0xff]
      %v506 = vld [vmem:[%s504 + $0x8] sm:$0xff]
      %v507 = vld [vmem:[%s504 + $0x10] sm:$0xff]
      %v508 = vld [vmem:[%s504 + $0x18] sm:$0xff]
      %v509 = vld [vmem:[%s504 + $0x20] sm:$0xff]
      %v510 = vld [vmem:[%s504 + $0x28] sm:$0xff]
      %v511 = vld [vmem:[%s504 + $0x30] sm:$0xff]
      %v512 = vld [vmem:[%s504 + $0x38] sm:$0xff]
      %v513 = vld [vmem:[%s504 + $0x40] sm:$0xff]
      %v515 = vsel %vm203, %v496, 0
      %v518 = vsel %vm203, %v497, 0
      %v521 = vsel %vm203, %v498, 0
      %v524 = vsel %vm203, %v499, 0
      %v527 = vsel %vm203, %v500, 0
      %v530 = vsel %vm203, %v501, 0
      %v533 = vsel %vm203, %v502, 0
      %v536 = vsel %vm203, %v503, 0
      %538 = vmatprep.subr.mxu0 0.0
      %539 = vmatpush1.msra.mxu0 %v505
      %540 = vmatprep.subr.mxu0 0.0
      %541 = vmatpush1.msra.mxu0 %v506
      %542 = vmatprep.subr.mxu0 0.0
      %543 = vmatpush1.msra.mxu0 %v507
      %544 = vmatprep.subr.mxu0 0.0
      %545 = vmatpush1.msra.mxu0 %v508
      %546 = vmatprep.subr.mxu0 0.0
      %547 = vmatpush1.msra.mxu0 %v509
      %548 = vmatprep.subr.mxu0 0.0
      %549 = vmatpush1.msra.mxu0 %v510
      %550 = vmatprep.subr.mxu0 0.0
      %551 = vmatpush1.msra.mxu0 %v511
      %552 = vmatprep.subr.mxu0 0.0
      %553 = vmatpush1.msra.mxu0 %v512
      %554 = vmatprep.subr.mxu0 0.0
      %555 = vmatpush1.msra.mxu0 %v513
      %556 = vmatprep.subr.mxu0 0.0
      %557 = vmatpush1.msra.mxu0 0.0
      %558 = vmatprep.subr.mxu0 0.0
      %559 = vmatpush1.msra.mxu0 0.0
      %560 = vmatprep.subr.mxu0 0.0
      %561 = vmatpush1.msra.mxu0 0.0
      %562 = vmatprep.subr.mxu0 0.0
      %563 = vmatpush1.msra.mxu0 0.0
      %564 = vmatprep.subr.mxu0 0.0
      %565 = vmatpush1.msra.mxu0 0.0
      %566 = vmatprep.subr.mxu0 0.0
      %567 = vmatpush1.msra.mxu0 0.0
      %568 = vmatprep.subr.mxu0 0.0
      %569 = vmatpush1.msra.mxu0 0.0
      %570 = vmatprep.subr.mxu0 0.0
      %571 = vmatpush1.msra.mxu0 0.0
      %572 = vmatprep.subr.mxu0 0.0
      %573 = vmatpush1.msra.mxu0 0.0
      %574 = vmatprep.subr.mxu0 0.0
      %575 = vmatpush1.msra.mxu0 0.0
      %576 = vmatprep.subr.mxu0 0.0
      %577 = vmatpush1.msra.mxu0 0.0
      %578 = vmatprep.subr.mxu0 0.0
      %579 = vmatpush1.msra.mxu0 0.0
      %580 = vmatprep.subr.mxu0 0.0
      %581 = vmatpush1.msra.mxu0 0.0
      %582 = vmatprep.subr.mxu0 0.0
      %583 = vmatpush1.msra.mxu0 0.0
      %584 = vmatprep.subr.mxu0 0.0
      %585 = vmatpush1.msra.mxu0 0.0
      %586 = vmatprep.subr.mxu0 0.0
      %587 = vmatpush1.msra.mxu0 0.0
      %588 = vmatprep.subr.mxu0 0.0
      %589 = vmatpush1.msra.mxu0 0.0
      %590 = vmatprep.subr.mxu0 0.0
      %591 = vmatpush1.msra.mxu0 0.0
      %592 = vmatprep.subr.mxu0 0.0
      %593 = vmatpush1.msra.mxu0 0.0
      %594 = vmatprep.subr.mxu0 0.0
      %595 = vmatpush1.msra.mxu0 0.0
      %596 = vmatprep.subr.mxu0 0.0
      %597 = vmatpush1.msra.mxu0 0.0
      %598 = vmatprep.subr.mxu0 0.0
      %599 = vmatpush1.msra.mxu0 0.0
      %600 = vmatprep.subr.mxu0 0.0
      %601 = vmatpush1.msra.mxu0 0.0
      %602 = vmatprep.mubr.f32.mxu0 0.0
      %603 = vmatmul.mubr.f32.gmra.mrb[0].mxu0 %v515
      %v604 = vpop.f32.mrb[0].mxu0
      %v605 = vadd.f32 0.0, %v604
      %v606 = vpop.f32.mrb[0].mxu0
      %607 = vmatprep.mubr.f32.mxu0 0.0
      %608 = vmatmul.mubr.f32.gmra.mrb[0].mxu0 %v518
      %v609 = vpop.f32.mrb[0].mxu0
      %v610 = vadd.f32 0.0, %v609
      %v611 = vpop.f32.mrb[0].mxu0
      %612 = vmatprep.mubr.f32.mxu0 0.0
      %613 = vmatmul.mubr.f32.gmra.mrb[0].mxu0 %v521
      %v614 = vpop.f32.mrb[0].mxu0
      %v615 = vadd.f32 0.0, %v614
      %v616 = vpop.f32.mrb[0].mxu0
      %617 = vmatprep.mubr.f32.mxu0 0.0
      %618 = vmatmul.mubr.f32.gmra.mrb[0].mxu0 %v524
      %v619 = vpop.f32.mrb[0].mxu0
      %v620 = vadd.f32 0.0, %v619
      %v621 = vpop.f32.mrb[0].mxu0
      %622 = vmatprep.mubr.f32.mxu0 0.0
      %623 = vmatmul.mubr.f32.gmra.mrb[0].mxu0 %v527
      %v624 = vpop.f32.mrb[0].mxu0
      %v625 = vadd.f32 0.0, %v624
      %v626 = vpop.f32.mrb[0].mxu0
      %627 = vmatprep.mubr.f32.mxu0 0.0
      %628 = vmatmul.mubr.f32.gmra.mrb[0].mxu0 %v530
      %v629 = vpop.f32.mrb[0].mxu0
      %v630 = vadd.f32 0.0, %v629
      %v631 = vpop.f32.mrb[0].mxu0
      %632 = vmatprep.mubr.f32.mxu0 0.0
      %633 = vmatmul.mubr.f32.gmra.mrb[0].mxu0 %v533
      %v634 = vpop.f32.mrb[0].mxu0
      %v635 = vadd.f32 0.0, %v634
      %v636 = vpop.f32.mrb[0].mxu0
      %637 = vmatprep.mubr.f32.mxu0 0.0
      %638 = vmatmul.mubr.f32.gmra.mrb[0].mxu0 %v536
      %v639 = vpop.f32.mrb[0].mxu0
      %v640 = vadd.f32 0.0, %v639
      %v641 = vpop.f32.mrb[0].mxu0
      %642 = vdwg.mxu0
      %v643 = vadd.f32 %v488, %v605
      %v644 = vadd.f32 %v489, %v610
      %v645 = vadd.f32 %v490, %v615
      %v646 = vadd.f32 %v491, %v620
      %v647 = vadd.f32 %v492, %v625
      %v648 = vadd.f32 %v493, %v630
      %v649 = vadd.f32 %v494, %v635
      %v650 = vadd.f32 %v495, %v640
      %651 = vst [vmem:[%s177] sm:$0xff] %v643
      %652 = vst [vmem:[%s177 + $0x8] sm:$0xff] %v644
      %653 = vst [vmem:[%s177 + $0x10] sm:$0xff] %v645
      %654 = vst [vmem:[%s177 + $0x18] sm:$0xff] %v646
      %655 = vst [vmem:[%s177 + $0x20] sm:$0xff] %v647
      %656 = vst [vmem:[%s177 + $0x28] sm:$0xff] %v648
      %657 = vst [vmem:[%s177 + $0x30] sm:$0xff] %v649
      %658 = vst [vmem:[%s177 + $0x38] sm:$0xff] %v650
      %s659 = smul.u32 4, %s14
      %p660 = scmp.lt.s32.totalorder %s659, 15
      %s661 = scalar_select %p660, %s659, 15
      %s662 = smul.addr %s661, 2
      %s663 = smul.addr %s662, 8
      %s664 = scalar_lea.vmem %s3, %s663
      // Predicated region
      $region33: #{time_distributed_conv2d.1} parent=31 // pred_check
        %p665 = pneg %p100
      $region34: #{time_distributed_conv2d.1} parent=31 // pred_check_branch
        %667 = sbr.rel (%p665) target = $region36
      $region35: #{time_distributed_conv2d.1} parent=31 // pred_region
        %s668 = smul.u32 4, %s14
      $region36: #{time_distributed_conv2d.1} parent=31 // pred_fallthru
        _
    $region32: #{time_distributed_conv2d.1} parent=5 // pred_fallthru
      _
    %p669 = scmp.le.s32.totalorder 2, %s9
    // Predicated region
    $region37: #{time_distributed_conv2d.1} parent=5 // pred_check
      %p670 = pneg %p669
    $region38: #{time_distributed_conv2d.1} parent=5 // pred_check_branch
      %672 = sbr.rel (%p670) target = $region40
    $region39: #{time_distributed_conv2d.1} parent=5 // pred_region
      %s673 = ssub.s32 %s9, 2
      // Predicated region
      $region41: #{time_distributed_conv2d.1} parent=39 // pred_check
        %p674 = pneg %p106
      $region42: #{time_distributed_conv2d.1} parent=39 // pred_check_branch
        %676 = sbr.rel (%p674) target = $region44
      $region43: #{time_distributed_conv2d.1} parent=39 // pred_region
        %s677 = smul.u32 4, %s15
        %p678 = scmp.lt.s32.totalorder %s677, 15
        %s679 = scalar_select %p678, %s677, 15
        %s680 = smul.addr %s679, 2
        %s681 = smul.addr %s680, 8
        %s682 = scalar_lea.vmem %s3, %s681
      $region44: #{time_distributed_conv2d.1} parent=39 // pred_fallthru
        _
    $region40: #{time_distributed_conv2d.1} parent=5 // pred_fallthru
      _
  $region6: #{time_distributed_conv2d.1} parent=0 // loop_footer
    %s13 = sadd.s32 1, %s9
  $region7: #{time_distributed_conv2d.1} parent=0 // loop_footer_branch
    %8 = sbr.rel target = $region3
  $region8: #{time_distributed_conv2d.1} parent=0 // loop_exit
    _

</llo_original>
